<compile_context>
chip_gen: v7x
topology: tpu7x:2x2x1
jax: 0.10.0
libtpu: 0.0.40
codegen_flags: <defaults>
</compile_context>

<pallas_src>
import jax
import jax.numpy as jnp
from jax.experimental import pallas as pl
from jax.experimental.pallas import tpu as pltpu


def patch_embed_kernel(p_ref, w_ref, add0_ref, addb_ref, out_ref):
    # p_ref    : (bb, N, K)    patches for bb images (compute dtype, e.g. bf16)
    # w_ref    : (K, E)        flattened conv weight (compute dtype)
    # add0_ref : (1, E)        cls_token + pos[0]           (f32)
    # addb_ref : (N, E)        conv_bias + pos[1:]          (f32)
    # out_ref  : (bb, N+1, E)  output block
    bb, n, k = p_ref.shape
    e = w_ref.shape[1]

    # One big MXU matmul: merge leading dims so M = bb*N (not just N).
    lhs = p_ref[...].reshape(bb * n, k)
    proj = jnp.dot(lhs, w_ref[...], preferred_element_type=jnp.float32)
    proj = proj.reshape(bb, n, e) + addb_ref[...][None, :, :]

    out_ref[:, 0:1, :] = jnp.broadcast_to(add0_ref[...], (bb, 1, e)).astype(out_ref.dtype)
    out_ref[:, 1:, :] = proj.astype(out_ref.dtype)


def patch_embedding(x, conv_w, conv_b, cls_token, pos_embed, patch_size,
                    compute_dtype=jnp.bfloat16):
    """x: (B, C, H, W) float32 (NCHW, like PyTorch).  Returns (B, N+1, E) in x.dtype."""
    B, C, H, W = x.shape
    P = patch_size
    Hp, Wp = H // P, W // P
    N = Hp * Wp
    E = conv_w.shape[0]
    K = C * P * P

    # Patchify: (B, C, H, W) -> (B, N, C*P*P), patch features in (c, ph, pw) order.
    # With allow_input_fusion on this operand XLA may fuse this producer into
    # the kernel's input DMA (no separate HBM round trip).
    patches = x.reshape(B, C, Hp, P, Wp, P)
    patches = jnp.transpose(patches, (0, 2, 4, 1, 3, 5)).reshape(B, N, K)
    patches = patches.astype(compute_dtype)

    # Conv2d weight (E, C, P, P) -> (K, E) in matching (c, ph, pw) order.
    w_flat = conv_w.reshape(E, K).T.astype(compute_dtype)

    # Precomputed add tables (f32): cls row and per-patch (bias + pos) table.
    pos = pos_embed.reshape(N + 1, E).astype(jnp.float32)
    add0 = (cls_token.reshape(1, E).astype(jnp.float32) + pos[0:1, :])     # (1, E)
    add_body = (conv_b.reshape(1, E).astype(jnp.float32) + pos[1:, :])     # (N, E)

    # Pick how many images to fold into one grid step: target ~256 MXU rows,
    # keep the double-buffered lhs block under a modest VMEM budget, and keep
    # >=2 grid steps when each step would still have non-trivial (>=128-row)
    # work (v7x has 2 TensorCores).
    cbytes = jnp.dtype(compute_dtype).itemsize
    obytes = jnp.dtype(x.dtype).itemsize
    target_rows = 256
    divisors = [d for d in range(1, B + 1) if B % d == 0]
    ok = [d for d in divisors
          if d * N <= max(target_rows, N)
          and 2 * d * N * K * cbytes <= (8 << 20)]
    if not ok:
        ok = [1]
    pref = [d for d in ok if (B // d) >= 2 and d * N >= 128]
    bb = max(pref) if pref else max(ok)

    # Explicit (conservative) VMEM limit: double-buffered lhs + output blocks,
    # plus the batch-invariant weight / add tables.
    est_vmem = (2 * bb * N * K * cbytes
                + 2 * bb * (N + 1) * E * obytes
                + 2 * K * E * cbytes
                + 2 * (N + 1) * E * 4)
    vmem_limit = int(min(max(2 * est_vmem, 4 << 20), 32 << 20))

    out = pl.pallas_call(
        patch_embed_kernel,
        out_shape=jax.ShapeDtypeStruct((B, N + 1, E), x.dtype),
        grid_spec=pltpu.PrefetchScalarGridSpec(
            num_scalar_prefetch=0,
            grid=(B // bb,),
            in_specs=[
                pl.BlockSpec((bb, N, K), lambda i: (i, 0, 0)),
                pl.BlockSpec((K, E), lambda i: (0, 0)),
                pl.BlockSpec((1, E), lambda i: (0, 0)),
                pl.BlockSpec((N, E), lambda i: (0, 0)),
            ],
            out_specs=pl.BlockSpec((bb, N + 1, E), lambda i: (i, 0, 0)),
        ),
        compiler_params=pltpu.CompilerParams(
            dimension_semantics=("parallel",),
            # Allow XLA to fuse the patchify transpose/reshape/cast producer
            # into the input DMA for operand 0 (patches) only.
            allow_input_fusion=[True, False, False, False],
            vmem_limit_bytes=vmem_limit,
        ),
    )(patches, w_flat, add0, add_body)
    return out


def reference_patch_embedding(x, conv_w, conv_b, cls_token, pos_embed, patch_size):
    """Pure-JAX reference mirroring the PyTorch forward (f32 conv path)."""
    B, C, H, W = x.shape
    P = patch_size
    y = jax.lax.conv_general_dilated(
        x, conv_w, window_strides=(P, P), padding="VALID",
        dimension_numbers=("NCHW", "OIHW", "NCHW"))
    y = y + conv_b.reshape(1, -1, 1, 1)
    B_, E, Hp, Wp = y.shape
    y = y.reshape(B_, E, Hp * Wp).transpose(0, 2, 1)          # (B, N, E)
    cls = jnp.broadcast_to(cls_token, (B_, 1, E))
    y = jnp.concatenate([cls, y], axis=1)                      # (B, N+1, E)
    return y + pos_embed


if __name__ == "__main__":
    # Small shapes consistent with the module: img_size=16, patch_size=4,
    # in_channels=4, embed_dim=32.
    B, C, H, W = 2, 4, 16, 16
    P = 4
    E = 32
    N = (H // P) * (W // P)

    key = jax.random.PRNGKey(0)
    k_x, k_w, k_b, k_cls, k_pos = jax.random.split(key, 5)

    x = jax.random.normal(k_x, (B, C, H, W), dtype=jnp.float32)
    conv_w = jax.random.normal(k_w, (E, C, P, P), dtype=jnp.float32) * 0.05
    conv_b = jax.random.normal(k_b, (E,), dtype=jnp.float32) * 0.05
    cls_token = jax.random.normal(k_cls, (1, 1, E), dtype=jnp.float32)
    pos_embed = jax.random.normal(k_pos, (1, N + 1, E), dtype=jnp.float32)

    ref = jax.block_until_ready(
        reference_patch_embedding(x, conv_w, conv_b, cls_token, pos_embed, P))

    # 1) f32 matmul path: must match the conv reference tightly.
    out_f32 = jax.block_until_ready(
        patch_embedding(x, conv_w, conv_b, cls_token, pos_embed, P,
                        compute_dtype=jnp.float32))
    assert out_f32.shape == (B, N + 1, E), out_f32.shape
    assert jnp.allclose(out_f32, ref, atol=1e-4, rtol=1e-4), \
        float(jnp.max(jnp.abs(out_f32 - ref)))

    # 2) Default bf16-operand path (v6e/v7x guidance): f32 MXU accumulation,
    #    so the only difference vs. the f32 reference is bf16 input rounding.
    out_bf16 = jax.block_until_ready(
        patch_embedding(x, conv_w, conv_b, cls_token, pos_embed, P))
    assert out_bf16.shape == (B, N + 1, E), out_bf16.shape
    assert jnp.allclose(out_bf16, ref, atol=3e-2, rtol=3e-2), \
        float(jnp.max(jnp.abs(out_bf16 - ref)))

    print("KERNEL_OK")
</pallas_src>

<mosaic_0001>
module attributes {stable_mosaic.version = 11 : i64} {
  func.func @patch_embed_kernel(%arg0: i32, %arg1: memref<2x16x64xf32, #tpu.memory_space<vmem>>, %arg2: memref<64x32xf32, #tpu.memory_space<vmem>>, %arg3: memref<1x32xf32, #tpu.memory_space<vmem>>, %arg4: memref<16x32xf32, #tpu.memory_space<vmem>>, %arg5: memref<2x17x32xf32, #tpu.memory_space<vmem>>) attributes {dimension_semantics = [#tpu.dimension_semantics<parallel>], iteration_bounds = array<i64: 1>, scalar_prefetch = 0 : i64, scratch_operands = 0 : i64, tpu.core_type = #tpu.core_type<tc>, window_params = [{transform_indices = @transform_0, window_bounds = array<i64: 2, 16, 64>}, {pipeline_mode = #tpu.pipeline_mode<synchronous>, transform_indices = @transform_1, window_bounds = array<i64: 64, 32>}, {pipeline_mode = #tpu.pipeline_mode<synchronous>, transform_indices = @transform_2, window_bounds = array<i64: 1, 32>}, {pipeline_mode = #tpu.pipeline_mode<synchronous>, transform_indices = @transform_3, window_bounds = array<i64: 16, 32>}, {transform_indices = @transform_4, window_bounds = array<i64: 2, 17, 32>}]} {
    %c0 = arith.constant 0 : index
    %c0_0 = arith.constant 0 : index
    %c0_1 = arith.constant 0 : index
    %0 = vector.load %arg1[%c0, %c0_0, %c0_1] : memref<2x16x64xf32, #tpu.memory_space<vmem>>, vector<2x16x64xf32>
    %1 = vector.shape_cast %0 : vector<2x16x64xf32> to vector<32x64xf32>
    %c0_2 = arith.constant 0 : index
    %c0_3 = arith.constant 0 : index
    %2 = vector.load %arg2[%c0_2, %c0_3] : memref<64x32xf32, #tpu.memory_space<vmem>>, vector<64x32xf32>
    %cst = arith.constant dense<0.000000e+00> : vector<32x32xf32>
    %3 = tpu.matmul %1, %2, %cst {dimension_numbers = #tpu.dot_dimension_numbers<[1], [0], [0], [1], [0, 0, 1, 1], [], []>} : vector<32x64xf32>, vector<64x32xf32>, vector<32x32xf32> -> vector<32x32xf32>
    %4 = vector.shape_cast %3 : vector<32x32xf32> to vector<2x16x32xf32>
    %c0_4 = arith.constant 0 : index
    %c0_5 = arith.constant 0 : index
    %5 = vector.load %arg4[%c0_4, %c0_5] : memref<16x32xf32, #tpu.memory_space<vmem>>, vector<16x32xf32>
    %6 = vector.shape_cast %5 : vector<16x32xf32> to vector<1x16x32xf32>
    %7 = vector.broadcast %6 : vector<1x16x32xf32> to vector<2x16x32xf32>
    %8 = arith.addf %4, %7 : vector<2x16x32xf32>
    %c0_6 = arith.constant 0 : index
    %c0_7 = arith.constant 0 : index
    %9 = vector.load %arg3[%c0_6, %c0_7] : memref<1x32xf32, #tpu.memory_space<vmem>>, vector<1x32xf32>
    %10 = vector.shape_cast %9 : vector<1x32xf32> to vector<1x1x32xf32>
    %11 = vector.broadcast %10 : vector<1x1x32xf32> to vector<2x1x32xf32>
    %c0_8 = arith.constant 0 : index
    %c0_9 = arith.constant 0 : index
    %c0_10 = arith.constant 0 : index
    %12 = vector.load %arg5[%c0_8, %c0_9, %c0_10] : memref<2x17x32xf32, #tpu.memory_space<vmem>>, vector<2x1x32xf32>
    tpu.vector_store %arg5[%c0_8, %c0_9, %c0_10], %11 {strides = array<i32>} : memref<2x17x32xf32, #tpu.memory_space<vmem>>, vector<2x1x32xf32>,
    %c0_11 = arith.constant 0 : index
    %c1 = arith.constant 1 : index
    %c0_12 = arith.constant 0 : index
    %13 = vector.load %arg5[%c0_11, %c1, %c0_12] : memref<2x17x32xf32, #tpu.memory_space<vmem>>, vector<2x16x32xf32>
    tpu.vector_store %arg5[%c0_11, %c1, %c0_12], %8 {strides = array<i32>} : memref<2x17x32xf32, #tpu.memory_space<vmem>>, vector<2x16x32xf32>,
    return
  }
  func.func @transform_0(%arg0: i32) -> (i32, i32, i32) {
    %c0_i32 = arith.constant 0 : i32
    %c0_i32_0 = arith.constant 0 : i32
    %c0_i32_1 = arith.constant 0 : i32
    return %arg0, %c0_i32, %c0_i32_0 : i32, i32, i32
  }
  func.func @transform_1(%arg0: i32) -> (i32, i32) {
    %c0_i32 = arith.constant 0 : i32
    %c0_i32_0 = arith.constant 0 : i32
    %c0_i32_1 = arith.constant 0 : i32
    return %c0_i32, %c0_i32_0 : i32, i32
  }
  func.func @transform_2(%arg0: i32) -> (i32, i32) {
    %c0_i32 = arith.constant 0 : i32
    %c0_i32_0 = arith.constant 0 : i32
    %c0_i32_1 = arith.constant 0 : i32
    return %c0_i32, %c0_i32_0 : i32, i32
  }
  func.func @transform_3(%arg0: i32) -> (i32, i32) {
    %c0_i32 = arith.constant 0 : i32
    %c0_i32_0 = arith.constant 0 : i32
    %c0_i32_1 = arith.constant 0 : i32
    return %c0_i32, %c0_i32_0 : i32, i32
  }
  func.func @transform_4(%arg0: i32) -> (i32, i32, i32) {
    %c0_i32 = arith.constant 0 : i32
    %c0_i32_0 = arith.constant 0 : i32
    %c0_i32_1 = arith.constant 0 : i32
    return %arg0, %c0_i32, %c0_i32_0 : i32, i32, i32
  }
}

</mosaic_0001>

<llo_original>
// kernel: tpu_custom_call.1
$region0: #{tpu_custom_call.1}
  #allocation0 [shape = 'u32[]', space=smem, size = 0x4, offset = 0x4, fixed_abs, tag = 'smem constant byte address 0x4 - core index']
  #allocation1 [shape = 'u32[144,128]{1,0:T(1,128)}', space=vmem, size = 0x12000, scoped, tag = 'internal scratch']
  %s0 = inlined_call_operand.vmem [shape: f32[2,16,64], index: 0, kind: input, shape index: {}]
  %s1 = inlined_call_operand.vmem [shape: f32[64,32], index: 1, kind: input, shape index: {}]
  %s2 = inlined_call_operand.vmem [shape: f32[1,32], index: 2, kind: input, shape index: {}]
  %s3 = inlined_call_operand.vmem [shape: f32[16,32], index: 3, kind: input, shape index: {}]
  %s4 = inlined_call_operand.vmem [shape: f32[2,17,32], index: 4, kind: output, shape index: {}]
  %s5 = sld [smem:[#allocation0]]
  $region26: #{tpu_custom_call.1} parent=0
    _
  %s7 = ssub.s32 1, %s5
  %s8 = scalar_select 0, %s7, %s5
  // Predicated region
  $region2: #{tpu_custom_call.1} parent=0 // pred_check
    _
  $region3: #{tpu_custom_call.1} parent=0 // pred_check_branch
    %10 = sbr.rel (0) target = $region5
  $region4: #{tpu_custom_call.1} parent=0 // pred_region
    _
  $region5: #{tpu_custom_call.1} parent=0 // pred_fallthru
    _
  // Predicated region
  $region6: #{tpu_custom_call.1} parent=0 // pred_check
    _
  $region7: #{tpu_custom_call.1} parent=0 // pred_check_branch
    %12 = sbr.rel (0) target = $region9
  $region8: #{tpu_custom_call.1} parent=0 // pred_region
    _
  $region9: #{tpu_custom_call.1} parent=0 // pred_fallthru
    _
  // Predicated region
  $region10: #{tpu_custom_call.1} parent=0 // pred_check
    _
  $region11: #{tpu_custom_call.1} parent=0 // pred_check_branch
    %14 = sbr.rel (0) target = $region13
  $region12: #{tpu_custom_call.1} parent=0 // pred_region
    _
  $region13: #{tpu_custom_call.1} parent=0 // pred_fallthru
    _
  // Predicated region
  $region14: #{tpu_custom_call.1} parent=0 // pred_check
    _
  $region15: #{tpu_custom_call.1} parent=0 // pred_check_branch
    %16 = sbr.rel (0) target = $region17
  $region16: #{tpu_custom_call.1} parent=0 // pred_region
    _
  $region17: #{tpu_custom_call.1} parent=0 // pred_fallthru
    _
  %v17 = vld [vmem:[%s0] sm:$0xff]
  %v18 = vld [vmem:[%s0 + $0x8] sm:$0xff]
  %v19 = vld [vmem:[%s0 + $0x10] sm:$0xff]
  %v20 = vld [vmem:[%s0 + $0x18] sm:$0xff]
  %v21 = vld [vmem:[%s1] sm:$0xff]
  %v22 = vld [vmem:[%s1 + $0x8] sm:$0xff]
  %v23 = vld [vmem:[%s1 + $0x10] sm:$0xff]
  %v24 = vld [vmem:[%s1 + $0x18] sm:$0xff]
  %v25 = vld [vmem:[%s1 + $0x20] sm:$0xff]
  %v26 = vld [vmem:[%s1 + $0x28] sm:$0xff]
  %v27 = vld [vmem:[%s1 + $0x30] sm:$0xff]
  %v28 = vld [vmem:[%s1 + $0x38] sm:$0xff]
  %vm29 = vcmask 523264
  %v31 = vsel %vm29, %v17, 0
  %v34 = vsel %vm29, %v18, 0
  %v37 = vsel %vm29, %v19, 0
  %v40 = vsel %vm29, %v20, 0
  %42 = vmatprep.subr.mxu0 0.0
  %43 = vmatpush1.msra.mxu0 %v21
  %44 = vmatprep.subr.mxu0 0.0
  %45 = vmatpush1.msra.mxu0 %v22
  %46 = vmatprep.subr.mxu0 0.0
  %47 = vmatpush1.msra.mxu0 %v23
  %48 = vmatprep.subr.mxu0 0.0
  %49 = vmatpush1.msra.mxu0 %v24
  %50 = vmatprep.subr.mxu0 0.0
  %51 = vmatpush1.msra.mxu0 %v25
  %52 = vmatprep.subr.mxu0 0.0
  %53 = vmatpush1.msra.mxu0 %v26
  %54 = vmatprep.subr.mxu0 0.0
  %55 = vmatpush1.msra.mxu0 %v27
  %56 = vmatprep.subr.mxu0 0.0
  %57 = vmatpush1.msra.mxu0 %v28
  %58 = vmatprep.subr.mxu0 0.0
  %59 = vmatpush1.msra.mxu0 0.0
  %60 = vmatprep.subr.mxu0 0.0
  %61 = vmatpush1.msra.mxu0 0.0
  %62 = vmatprep.subr.mxu0 0.0
  %63 = vmatpush1.msra.mxu0 0.0
  %64 = vmatprep.subr.mxu0 0.0
  %65 = vmatpush1.msra.mxu0 0.0
  %66 = vmatprep.subr.mxu0 0.0
  %67 = vmatpush1.msra.mxu0 0.0
  %68 = vmatprep.subr.mxu0 0.0
  %69 = vmatpush1.msra.mxu0 0.0
  %70 = vmatprep.subr.mxu0 0.0
  %71 = vmatpush1.msra.mxu0 0.0
  %72 = vmatprep.subr.mxu0 0.0
  %73 = vmatpush1.msra.mxu0 0.0
  %74 = vmatprep.subr.mxu0 0.0
  %75 = vmatpush1.msra.mxu0 0.0
  %76 = vmatprep.subr.mxu0 0.0
  %77 = vmatpush1.msra.mxu0 0.0
  %78 = vmatprep.subr.mxu0 0.0
  %79 = vmatpush1.msra.mxu0 0.0
  %80 = vmatprep.subr.mxu0 0.0
  %81 = vmatpush1.msra.mxu0 0.0
  %82 = vmatprep.subr.mxu0 0.0
  %83 = vmatpush1.msra.mxu0 0.0
  %84 = vmatprep.subr.mxu0 0.0
  %85 = vmatpush1.msra.mxu0 0.0
  %86 = vmatprep.subr.mxu0 0.0
  %87 = vmatpush1.msra.mxu0 0.0
  %88 = vmatprep.subr.mxu0 0.0
  %89 = vmatpush1.msra.mxu0 0.0
  %90 = vmatprep.subr.mxu0 0.0
  %91 = vmatpush1.msra.mxu0 0.0
  %92 = vmatprep.subr.mxu0 0.0
  %93 = vmatpush1.msra.mxu0 0.0
  %94 = vmatprep.subr.mxu0 0.0
  %95 = vmatpush1.msra.mxu0 0.0
  %96 = vmatprep.subr.mxu0 0.0
  %97 = vmatpush1.msra.mxu0 0.0
  %98 = vmatprep.subr.mxu0 0.0
  %99 = vmatpush1.msra.mxu0 0.0
  %100 = vmatprep.subr.mxu0 0.0
  %101 = vmatpush1.msra.mxu0 0.0
  %102 = vmatprep.subr.mxu0 0.0
  %103 = vmatpush1.msra.mxu0 0.0
  %104 = vmatprep.subr.mxu0 0.0
  %105 = vmatpush1.msra.mxu0 0.0
  %106 = vmatprep.mubr.f32.mxu0 0.0
  %107 = vmatmul.mubr.f32.gmra.mrb[0].mxu0 %v31
  %v108 = vpop.f32.mrb[0].mxu0
  %v109 = vadd.f32 0.0, %v108
  %v110 = vpop.f32.mrb[0].mxu0
  %111 = vmatprep.mubr.f32.mxu0 0.0
  %112 = vmatmul.mubr.f32.gmra.mrb[0].mxu0 %v34
  %v113 = vpop.f32.mrb[0].mxu0
  %v114 = vadd.f32 0.0, %v113
  %v115 = vpop.f32.mrb[0].mxu0
  %116 = vmatprep.mubr.f32.mxu0 0.0
  %117 = vmatmul.mubr.f32.gmra.mrb[0].mxu0 %v37
  %v118 = vpop.f32.mrb[0].mxu0
  %v119 = vadd.f32 0.0, %v118
  %v120 = vpop.f32.mrb[0].mxu0
  %121 = vmatprep.mubr.f32.mxu0 0.0
  %122 = vmatmul.mubr.f32.gmra.mrb[0].mxu0 %v40
  %v123 = vpop.f32.mrb[0].mxu0
  %v124 = vadd.f32 0.0, %v123
  %v125 = vpop.f32.mrb[0].mxu0
  %126 = vdwg.mxu0
  %v127 = vld [vmem:[%s3] sm:$0xff]
  %v128 = vld [vmem:[%s3 + $0x8] sm:$0xff]
  %v129 = vadd.f32 %v109, %v127
  %v130 = vadd.f32 %v114, %v128
  %v131 = vadd.f32 %v119, %v127
  %v132 = vadd.f32 %v124, %v128
  %v133 = vld [vmem:[%s2] sm:$0x1]
  %vm134 = vcmask 253952
  %135 = vst.msk [vmem:[%s4] sm:$0x1] %vm134, %v133
  %136 = vst.msk [vmem:[%s4 + $0x18] sm:$0x1] %vm134, %v133
  %vm137 = vcmask 261120
  %138 = vst.msk [vmem:[%s4 + $0x1] sm:$0xff] %vm137, %v129
  %139 = vst.msk [vmem:[%s4 + $0x9] sm:$0xff] %vm137, %v130
  %140 = vst.msk [vmem:[%s4 + $0x19] sm:$0xff] %vm137, %v131
  %141 = vst.msk [vmem:[%s4 + $0x21] sm:$0xff] %vm137, %v132
  // Predicated region
  $region18: #{tpu_custom_call.1} parent=0 // pred_check
    _
  $region19: #{tpu_custom_call.1} parent=0 // pred_check_branch
    %143 = sbr.rel (0) target = $region21
  $region20: #{tpu_custom_call.1} parent=0 // pred_region
    _
  $region21: #{tpu_custom_call.1} parent=0 // pred_fallthru
    _
  // Predicated region
  $region22: #{tpu_custom_call.1} parent=0 // pred_check
    _
  $region23: #{tpu_custom_call.1} parent=0 // pred_check_branch
    %145 = sbr.rel (0) target = $region25
  $region24: #{tpu_custom_call.1} parent=0 // pred_region
    _
  $region25: #{tpu_custom_call.1} parent=0 // pred_fallthru
    _

</llo_original>
